<compile_context>
chip_gen: v7x
topology: tpu7x:2x2x1
jax: 0.10.0
libtpu: 0.0.40
codegen_flags: <defaults>
</compile_context>

<pallas_src>
import jax
import jax.numpy as jnp
from jax.experimental import pallas as pl
from jax.experimental.pallas import tpu as pltpu


def _round_up(x, m):
    return ((x + m - 1) // m) * m


def _patch_embed_kernel(x_ref, w_ref, b_ref, o_ref):
    # x_ref: (tm, K), w_ref: (K, E), b_ref: (1, E) f32, o_ref: (tm, E)
    acc = jnp.dot(x_ref[...], w_ref[...], preferred_element_type=jnp.float32)
    o_ref[...] = (acc + b_ref[...]).astype(o_ref.dtype)


def patch_embed_matmul(patches, weight_ke, bias_1e_f32, *, tm=1024, out_dtype=None):
    M, K = patches.shape
    K2, E = weight_ke.shape
    assert K2 == K
    out_dtype = out_dtype or patches.dtype

    # Tile rows only.  Clamp the tile to M (rounded up to the sublane multiple)
    # and to a VMEM budget that stays comfortably inside v7x's 64 MiB/TC.
    tm_eff = max(8, min(tm, _round_up(M, 8)))

    x_sz = jnp.dtype(patches.dtype).itemsize
    w_sz = jnp.dtype(weight_ke.dtype).itemsize
    o_sz = jnp.dtype(out_dtype).itemsize

    def _vmem_est(t):
        # double-buffered input/output tiles + weight/bias buffers
        return 2 * (t * K * x_sz + t * E * o_sz + K * E * w_sz + E * 4)

    while tm_eff > 256 and _vmem_est(tm_eff) > 40 * 1024 * 1024:
        tm_eff = _round_up(tm_eff // 2, 8)

    vmem_limit = int(min(48 * 1024 * 1024,
                         max(32 * 1024 * 1024,
                             _vmem_est(tm_eff) + 4 * 1024 * 1024)))

    grid_m = pl.cdiv(M, tm_eff)

    cost = pl.CostEstimate(
        flops=2 * M * K * E,
        transcendentals=0,
        bytes_accessed=M * K * x_sz + K * E * w_sz + E * 4 + M * E * o_sz,
    )

    return pl.pallas_call(
        _patch_embed_kernel,
        out_shape=jax.ShapeDtypeStruct((M, E), out_dtype),
        grid_spec=pltpu.PrefetchScalarGridSpec(
            num_scalar_prefetch=0,
            grid=(grid_m,),
            in_specs=[
                pl.BlockSpec((tm_eff, K), lambda i: (i, 0)),
                # Constant index maps: weight & bias are fetched once and
                # reused across every grid step.
                pl.BlockSpec((K, E), lambda i: (0, 0)),
                pl.BlockSpec((1, E), lambda i: (0, 0)),
            ],
            out_specs=pl.BlockSpec((tm_eff, E), lambda i: (i, 0)),
        ),
        compiler_params=pltpu.CompilerParams(
            dimension_semantics=("parallel",),   # v7x: both TCs split the row tiles
            vmem_limit_bytes=vmem_limit,
        ),
        cost_estimate=cost,
    )(patches, weight_ke, bias_1e_f32)


def cogvideox_patch_embed(image_embeds, conv_weight, conv_bias, patch_size,
                          *, tm=1024, out_dtype=None):
    """image_embeds: (B, F, C, H, W)  ->  (B, F*(H/p)*(W/p), E)"""
    B, Fr, C, H, W = image_embeds.shape
    E = conv_weight.shape[0]
    p = patch_size
    Hp, Wp = H // p, W // p
    K = C * p * p

    # One XLA transpose pass: extract non-overlapping patches flattened in
    # (c, kh, kw) order (matches nn.Conv2d weight layout; keeps the stride-1
    # kw pairs innermost, the cheapest contiguous data-side permutation).
    x = image_embeds.reshape(B * Fr, C, Hp, p, Wp, p)
    x = jnp.transpose(x, (0, 2, 4, 1, 3, 5))            # (BF, Hp, Wp, C, p, p)
    patches = x.reshape(B * Fr * Hp * Wp, K)            # (M, K)

    w_ke = conv_weight.reshape(E, K).T                  # (K, E)  (tiny)
    b_1e = conv_bias.reshape(1, E).astype(jnp.float32)  # bias added in f32

    out = patch_embed_matmul(patches, w_ke, b_1e, tm=tm, out_dtype=out_dtype)

    # M is ordered (B, F, Hp, Wp), so PyTorch's view/flatten(3)/transpose(2,3)/
    # flatten(1,2) chain collapses to a free reshape.
    return out.reshape(B, Fr * Hp * Wp, E)


def _reference(x, w, b, p):
    """Plain-JAX reference of the PyTorch module (computed in f32)."""
    B, Fr, C, H, W = x.shape
    E = w.shape[0]
    Hp, Wp = H // p, W // p
    xf = x.astype(jnp.float32).reshape(B * Fr, C, Hp, p, Wp, p)
    xf = jnp.transpose(xf, (0, 2, 4, 1, 3, 5)).reshape(-1, C * p * p)
    out = xf @ w.astype(jnp.float32).reshape(E, -1).T + b.astype(jnp.float32)
    return out.reshape(B, Fr * Hp * Wp, E)


def _make_inputs(key, B, Fr, C, H, W, E, p, dtype):
    k_x, k_w, k_b = jax.random.split(key, 3)
    fan_in = C * p * p
    bound = 1.0 / (fan_in ** 0.5)
    x = jax.random.normal(k_x, (B, Fr, C, H, W), dtype=jnp.float32).astype(dtype)
    w = jax.random.uniform(k_w, (E, C, p, p), minval=-bound, maxval=bound,
                           dtype=jnp.float32).astype(dtype)
    b = jax.random.uniform(k_b, (E,), minval=-bound, maxval=bound,
                           dtype=jnp.float32).astype(dtype)
    return x, w, b


if __name__ == "__main__":
    key = jax.random.PRNGKey(0)
    k1, k2, k3 = jax.random.split(key, 3)
    p = 2

    # ---- Test 1: f32, default (large) tile; M (=256) smaller than the tile ----
    x, w, b = _make_inputs(k1, 2, 2, 4, 16, 16, 32, p, jnp.float32)
    out = jax.block_until_ready(cogvideox_patch_embed(x, w, b, p))
    ref = _reference(x, w, b, p)
    assert out.shape == ref.shape and out.dtype == jnp.float32
    assert jnp.allclose(out, ref, atol=1e-5, rtol=1e-5)

    # ---- Test 2: M (=288) NOT a multiple of tm (=128): ragged last block ----
    x, w, b = _make_inputs(k2, 1, 3, 4, 24, 16, 32, p, jnp.float32)
    out = jax.block_until_ready(cogvideox_patch_embed(x, w, b, p, tm=128))
    ref = _reference(x, w, b, p)
    assert out.shape == ref.shape
    assert jnp.allclose(out, ref, atol=1e-5, rtol=1e-5)

    # ---- Test 3: bf16 I/O (half HBM traffic), f32 MXU accumulation ----
    x, w, b = _make_inputs(k3, 2, 2, 4, 16, 16, 32, p, jnp.bfloat16)
    out = jax.block_until_ready(cogvideox_patch_embed(x, w, b, p))
    ref = _reference(x, w, b, p)
    assert out.dtype == jnp.bfloat16 and out.shape == ref.shape
    assert jnp.allclose(out.astype(jnp.float32), ref, atol=3e-2, rtol=3e-2)

    print("KERNEL_OK")
</pallas_src>

<mosaic_0001>
module attributes {stable_mosaic.version = 11 : i64} {
  func.func @_patch_embed_kernel(%arg0: i32, %arg1: memref<256x16xf32, #tpu.memory_space<vmem>>, %arg2: memref<16x32xf32, #tpu.memory_space<vmem>>, %arg3: memref<1x32xf32, #tpu.memory_space<vmem>>, %arg4: memref<256x32xf32, #tpu.memory_space<vmem>>) attributes {dimension_semantics = [#tpu.dimension_semantics<parallel>], iteration_bounds = array<i64: 1>, scalar_prefetch = 0 : i64, scratch_operands = 0 : i64, tpu.core_type = #tpu.core_type<tc>, window_params = [{transform_indices = @transform_0, window_bounds = array<i64: 256, 16>}, {pipeline_mode = #tpu.pipeline_mode<synchronous>, transform_indices = @transform_1, window_bounds = array<i64: 16, 32>}, {pipeline_mode = #tpu.pipeline_mode<synchronous>, transform_indices = @transform_2, window_bounds = array<i64: 1, 32>}, {transform_indices = @transform_3, window_bounds = array<i64: 256, 32>}]} {
    %c0 = arith.constant 0 : index
    %c0_0 = arith.constant 0 : index
    %0 = vector.load %arg1[%c0, %c0_0] : memref<256x16xf32, #tpu.memory_space<vmem>>, vector<256x16xf32>
    %c0_1 = arith.constant 0 : index
    %c0_2 = arith.constant 0 : index
    %1 = vector.load %arg2[%c0_1, %c0_2] : memref<16x32xf32, #tpu.memory_space<vmem>>, vector<16x32xf32>
    %cst = arith.constant dense<0.000000e+00> : vector<256x32xf32>
    %2 = tpu.matmul %0, %1, %cst {dimension_numbers = #tpu.dot_dimension_numbers<[1], [0], [0], [1], [0, 0, 1, 1], [], []>} : vector<256x16xf32>, vector<16x32xf32>, vector<256x32xf32> -> vector<256x32xf32>
    %c0_3 = arith.constant 0 : index
    %c0_4 = arith.constant 0 : index
    %3 = vector.load %arg3[%c0_3, %c0_4] : memref<1x32xf32, #tpu.memory_space<vmem>>, vector<1x32xf32>
    %4 = vector.broadcast %3 : vector<1x32xf32> to vector<256x32xf32>
    %5 = arith.addf %2, %4 : vector<256x32xf32>
    %c0_5 = arith.constant 0 : index
    %c0_6 = arith.constant 0 : index
    %6 = vector.load %arg4[%c0_5, %c0_6] : memref<256x32xf32, #tpu.memory_space<vmem>>, vector<256x32xf32>
    tpu.vector_store %arg4[%c0_5, %c0_6], %5 {strides = array<i32>} : memref<256x32xf32, #tpu.memory_space<vmem>>, vector<256x32xf32>,
    return
  }
  func.func @transform_0(%arg0: i32) -> (i32, i32) {
    %c0_i32 = arith.constant 0 : i32
    %c0_i32_0 = arith.constant 0 : i32
    return %arg0, %c0_i32 : i32, i32
  }
  func.func @transform_1(%arg0: i32) -> (i32, i32) {
    %c0_i32 = arith.constant 0 : i32
    %c0_i32_0 = arith.constant 0 : i32
    %c0_i32_1 = arith.constant 0 : i32
    return %c0_i32, %c0_i32_0 : i32, i32
  }
  func.func @transform_2(%arg0: i32) -> (i32, i32) {
    %c0_i32 = arith.constant 0 : i32
    %c0_i32_0 = arith.constant 0 : i32
    %c0_i32_1 = arith.constant 0 : i32
    return %c0_i32, %c0_i32_0 : i32, i32
  }
  func.func @transform_3(%arg0: i32) -> (i32, i32) {
    %c0_i32 = arith.constant 0 : i32
    %c0_i32_0 = arith.constant 0 : i32
    return %arg0, %c0_i32 : i32, i32
  }
}

</mosaic_0001>

<llo_original>
// kernel: tpu_custom_call.1
$region0: #{tpu_custom_call.1}
  #allocation0 [shape = 'u32[]', space=smem, size = 0x4, offset = 0x4, fixed_abs, tag = 'smem constant byte address 0x4 - core index']
  #allocation1 [shape = 'u32[144,128]{1,0:T(1,128)}', space=vmem, size = 0x12000, scoped, tag = 'internal scratch']
  %s0 = inlined_call_operand.vmem [shape: f32[256,16], index: 0, kind: input, shape index: {}]
  %s1 = inlined_call_operand.vmem [shape: f32[16,32], index: 1, kind: input, shape index: {}]
  %s2 = inlined_call_operand.vmem [shape: f32[1,32], index: 2, kind: input, shape index: {}]
  %s3 = inlined_call_operand.vmem [shape: f32[256,32], index: 3, kind: output, shape index: {}]
  %s4 = sld [smem:[#allocation0]]
  $region22: #{tpu_custom_call.1} parent=0
    _
  %s6 = ssub.s32 1, %s4
  %s7 = scalar_select 0, %s6, %s4
  // Predicated region
  $region2: #{tpu_custom_call.1} parent=0 // pred_check
    _
  $region3: #{tpu_custom_call.1} parent=0 // pred_check_branch
    %9 = sbr.rel (0) target = $region5
  $region4: #{tpu_custom_call.1} parent=0 // pred_region
    _
  $region5: #{tpu_custom_call.1} parent=0 // pred_fallthru
    _
  // Predicated region
  $region6: #{tpu_custom_call.1} parent=0 // pred_check
    _
  $region7: #{tpu_custom_call.1} parent=0 // pred_check_branch
    %11 = sbr.rel (0) target = $region9
  $region8: #{tpu_custom_call.1} parent=0 // pred_region
    _
  $region9: #{tpu_custom_call.1} parent=0 // pred_fallthru
    _
  // Predicated region
  $region10: #{tpu_custom_call.1} parent=0 // pred_check
    _
  $region11: #{tpu_custom_call.1} parent=0 // pred_check_branch
    %13 = sbr.rel (0) target = $region13
  $region12: #{tpu_custom_call.1} parent=0 // pred_region
    _
  $region13: #{tpu_custom_call.1} parent=0 // pred_fallthru
    _
  %v14 = vld [vmem:[%s0] sm:$0xff]
  %v15 = vld [vmem:[%s0 + $0x8] sm:$0xff]
  %v16 = vld [vmem:[%s0 + $0x10] sm:$0xff]
  %v17 = vld [vmem:[%s0 + $0x18] sm:$0xff]
  %v18 = vld [vmem:[%s0 + $0x20] sm:$0xff]
  %v19 = vld [vmem:[%s0 + $0x28] sm:$0xff]
  %v20 = vld [vmem:[%s0 + $0x30] sm:$0xff]
  %v21 = vld [vmem:[%s0 + $0x38] sm:$0xff]
  %v22 = vld [vmem:[%s0 + $0x40] sm:$0xff]
  %v23 = vld [vmem:[%s0 + $0x48] sm:$0xff]
  %v24 = vld [vmem:[%s0 + $0x50] sm:$0xff]
  %v25 = vld [vmem:[%s0 + $0x58] sm:$0xff]
  %v26 = vld [vmem:[%s0 + $0x60] sm:$0xff]
  %v27 = vld [vmem:[%s0 + $0x68] sm:$0xff]
  %v28 = vld [vmem:[%s0 + $0x70] sm:$0xff]
  %v29 = vld [vmem:[%s0 + $0x78] sm:$0xff]
  %v30 = vld [vmem:[%s0 + $0x80] sm:$0xff]
  %v31 = vld [vmem:[%s0 + $0x88] sm:$0xff]
  %v32 = vld [vmem:[%s0 + $0x90] sm:$0xff]
  %v33 = vld [vmem:[%s0 + $0x98] sm:$0xff]
  %v34 = vld [vmem:[%s0 + $0xa0] sm:$0xff]
  %v35 = vld [vmem:[%s0 + $0xa8] sm:$0xff]
  %v36 = vld [vmem:[%s0 + $0xb0] sm:$0xff]
  %v37 = vld [vmem:[%s0 + $0xb8] sm:$0xff]
  %v38 = vld [vmem:[%s0 + $0xc0] sm:$0xff]
  %v39 = vld [vmem:[%s0 + $0xc8] sm:$0xff]
  %v40 = vld [vmem:[%s0 + $0xd0] sm:$0xff]
  %v41 = vld [vmem:[%s0 + $0xd8] sm:$0xff]
  %v42 = vld [vmem:[%s0 + $0xe0] sm:$0xff]
  %v43 = vld [vmem:[%s0 + $0xe8] sm:$0xff]
  %v44 = vld [vmem:[%s0 + $0xf0] sm:$0xff]
  %v45 = vld [vmem:[%s0 + $0xf8] sm:$0xff]
  %v46 = vld [vmem:[%s1] sm:$0xff]
  %v47 = vld [vmem:[%s1 + $0x8] sm:$0xff]
  %v48 = vld [vmem:[%s2] sm:$0x1]
  %v50 = vlaneseq
  %v51 = vshrl.u32 %v50, 7
  %v52 = vsub.s32 0, %v51
  %v53 = vrot.slane %v48, %v52
  %vm55 = vcmask 130048
  %v57 = vsel %vm55, %v14, 0
  %v60 = vsel %vm55, %v15, 0
  %v63 = vsel %vm55, %v16, 0
  %v66 = vsel %vm55, %v17, 0
  %v69 = vsel %vm55, %v18, 0
  %v72 = vsel %vm55, %v19, 0
  %v75 = vsel %vm55, %v20, 0
  %v78 = vsel %vm55, %v21, 0
  %v81 = vsel %vm55, %v22, 0
  %v84 = vsel %vm55, %v23, 0
  %v87 = vsel %vm55, %v24, 0
  %v90 = vsel %vm55, %v25, 0
  %v93 = vsel %vm55, %v26, 0
  %v96 = vsel %vm55, %v27, 0
  %v99 = vsel %vm55, %v28, 0
  %v102 = vsel %vm55, %v29, 0
  %v105 = vsel %vm55, %v30, 0
  %v108 = vsel %vm55, %v31, 0
  %v111 = vsel %vm55, %v32, 0
  %v114 = vsel %vm55, %v33, 0
  %v117 = vsel %vm55, %v34, 0
  %v120 = vsel %vm55, %v35, 0
  %v123 = vsel %vm55, %v36, 0
  %v126 = vsel %vm55, %v37, 0
  %v129 = vsel %vm55, %v38, 0
  %v132 = vsel %vm55, %v39, 0
  %v135 = vsel %vm55, %v40, 0
  %v138 = vsel %vm55, %v41, 0
  %v141 = vsel %vm55, %v42, 0
  %v144 = vsel %vm55, %v43, 0
  %v147 = vsel %vm55, %v44, 0
  %v150 = vsel %vm55, %v45, 0
  %152 = vmatprep.subr.mxu0 0.0
  %153 = vmatpush1.msra.mxu0 %v46
  %154 = vmatprep.subr.mxu0 0.0
  %155 = vmatpush1.msra.mxu0 %v47
  %156 = vmatprep.subr.mxu0 0.0
  %157 = vmatpush1.msra.mxu0 0.0
  %158 = vmatprep.subr.mxu0 0.0
  %159 = vmatpush1.msra.mxu0 0.0
  %160 = vmatprep.subr.mxu0 0.0
  %161 = vmatpush1.msra.mxu0 0.0
  %162 = vmatprep.subr.mxu0 0.0
  %163 = vmatpush1.msra.mxu0 0.0
  %164 = vmatprep.subr.mxu0 0.0
  %165 = vmatpush1.msra.mxu0 0.0
  %166 = vmatprep.subr.mxu0 0.0
  %167 = vmatpush1.msra.mxu0 0.0
  %168 = vmatprep.subr.mxu0 0.0
  %169 = vmatpush1.msra.mxu0 0.0
  %170 = vmatprep.subr.mxu0 0.0
  %171 = vmatpush1.msra.mxu0 0.0
  %172 = vmatprep.subr.mxu0 0.0
  %173 = vmatpush1.msra.mxu0 0.0
  %174 = vmatprep.subr.mxu0 0.0
  %175 = vmatpush1.msra.mxu0 0.0
  %176 = vmatprep.subr.mxu0 0.0
  %177 = vmatpush1.msra.mxu0 0.0
  %178 = vmatprep.subr.mxu0 0.0
  %179 = vmatpush1.msra.mxu0 0.0
  %180 = vmatprep.subr.mxu0 0.0
  %181 = vmatpush1.msra.mxu0 0.0
  %182 = vmatprep.subr.mxu0 0.0
  %183 = vmatpush1.msra.mxu0 0.0
  %184 = vmatprep.subr.mxu0 0.0
  %185 = vmatpush1.msra.mxu0 0.0
  %186 = vmatprep.subr.mxu0 0.0
  %187 = vmatpush1.msra.mxu0 0.0
  %188 = vmatprep.subr.mxu0 0.0
  %189 = vmatpush1.msra.mxu0 0.0
  %190 = vmatprep.subr.mxu0 0.0
  %191 = vmatpush1.msra.mxu0 0.0
  %192 = vmatprep.subr.mxu0 0.0
  %193 = vmatpush1.msra.mxu0 0.0
  %194 = vmatprep.subr.mxu0 0.0
  %195 = vmatpush1.msra.mxu0 0.0
  %196 = vmatprep.subr.mxu0 0.0
  %197 = vmatpush1.msra.mxu0 0.0
  %198 = vmatprep.subr.mxu0 0.0
  %199 = vmatpush1.msra.mxu0 0.0
  %200 = vmatprep.subr.mxu0 0.0
  %201 = vmatpush1.msra.mxu0 0.0
  %202 = vmatprep.subr.mxu0 0.0
  %203 = vmatpush1.msra.mxu0 0.0
  %204 = vmatprep.subr.mxu0 0.0
  %205 = vmatpush1.msra.mxu0 0.0
  %206 = vmatprep.subr.mxu0 0.0
  %207 = vmatpush1.msra.mxu0 0.0
  %208 = vmatprep.subr.mxu0 0.0
  %209 = vmatpush1.msra.mxu0 0.0
  %210 = vmatprep.subr.mxu0 0.0
  %211 = vmatpush1.msra.mxu0 0.0
  %212 = vmatprep.subr.mxu0 0.0
  %213 = vmatpush1.msra.mxu0 0.0
  %214 = vmatprep.subr.mxu0 0.0
  %215 = vmatpush1.msra.mxu0 0.0
  %216 = vmatprep.mubr.f32.mxu0 0.0
  %217 = vmatmul.mubr.f32.gmra.mrb[0].mxu0 %v57
  %v218 = vpop.f32.mrb[0].mxu0
  %v219 = vadd.f32 %v53, %v218
  %v220 = vpop.f32.mrb[0].mxu0
  %221 = vmatprep.mubr.f32.mxu0 0.0
  %222 = vmatmul.mubr.f32.gmra.mrb[0].mxu0 %v60
  %v223 = vpop.f32.mrb[0].mxu0
  %v224 = vadd.f32 %v53, %v223
  %v225 = vpop.f32.mrb[0].mxu0
  %226 = vmatprep.mubr.f32.mxu0 0.0
  %227 = vmatmul.mubr.f32.gmra.mrb[0].mxu0 %v63
  %v228 = vpop.f32.mrb[0].mxu0
  %v229 = vadd.f32 %v53, %v228
  %v230 = vpop.f32.mrb[0].mxu0
  %231 = vmatprep.mubr.f32.mxu0 0.0
  %232 = vmatmul.mubr.f32.gmra.mrb[0].mxu0 %v66
  %v233 = vpop.f32.mrb[0].mxu0
  %v234 = vadd.f32 %v53, %v233
  %v235 = vpop.f32.mrb[0].mxu0
  %236 = vmatprep.mubr.f32.mxu0 0.0
  %237 = vmatmul.mubr.f32.gmra.mrb[0].mxu0 %v69
  %v238 = vpop.f32.mrb[0].mxu0
  %v239 = vadd.f32 %v53, %v238
  %v240 = vpop.f32.mrb[0].mxu0
  %241 = vmatprep.mubr.f32.mxu0 0.0
  %242 = vmatmul.mubr.f32.gmra.mrb[0].mxu0 %v72
  %v243 = vpop.f32.mrb[0].mxu0
  %v244 = vadd.f32 %v53, %v243
  %v245 = vpop.f32.mrb[0].mxu0
  %246 = vmatprep.mubr.f32.mxu0 0.0
  %247 = vmatmul.mubr.f32.gmra.mrb[0].mxu0 %v75
  %v248 = vpop.f32.mrb[0].mxu0
  %v249 = vadd.f32 %v53, %v248
  %v250 = vpop.f32.mrb[0].mxu0
  %251 = vmatprep.mubr.f32.mxu0 0.0
  %252 = vmatmul.mubr.f32.gmra.mrb[0].mxu0 %v78
  %v253 = vpop.f32.mrb[0].mxu0
  %v254 = vadd.f32 %v53, %v253
  %v255 = vpop.f32.mrb[0].mxu0
  %256 = vmatprep.mubr.f32.mxu0 0.0
  %257 = vmatmul.mubr.f32.gmra.mrb[0].mxu0 %v81
  %v258 = vpop.f32.mrb[0].mxu0
  %v259 = vadd.f32 %v53, %v258
  %v260 = vpop.f32.mrb[0].mxu0
  %261 = vmatprep.mubr.f32.mxu0 0.0
  %262 = vmatmul.mubr.f32.gmra.mrb[0].mxu0 %v84
  %v263 = vpop.f32.mrb[0].mxu0
  %v264 = vadd.f32 %v53, %v263
  %v265 = vpop.f32.mrb[0].mxu0
  %266 = vmatprep.mubr.f32.mxu0 0.0
  %267 = vmatmul.mubr.f32.gmra.mrb[0].mxu0 %v87
  %v268 = vpop.f32.mrb[0].mxu0
  %v269 = vadd.f32 %v53, %v268
  %v270 = vpop.f32.mrb[0].mxu0
  %271 = vmatprep.mubr.f32.mxu0 0.0
  %272 = vmatmul.mubr.f32.gmra.mrb[0].mxu0 %v90
  %v273 = vpop.f32.mrb[0].mxu0
  %v274 = vadd.f32 %v53, %v273
  %v275 = vpop.f32.mrb[0].mxu0
  %276 = vmatprep.mubr.f32.mxu0 0.0
  %277 = vmatmul.mubr.f32.gmra.mrb[0].mxu0 %v93
  %v278 = vpop.f32.mrb[0].mxu0
  %v279 = vadd.f32 %v53, %v278
  %v280 = vpop.f32.mrb[0].mxu0
  %281 = vmatprep.mubr.f32.mxu0 0.0
  %282 = vmatmul.mubr.f32.gmra.mrb[0].mxu0 %v96
  %v283 = vpop.f32.mrb[0].mxu0
  %v284 = vadd.f32 %v53, %v283
  %v285 = vpop.f32.mrb[0].mxu0
  %286 = vmatprep.mubr.f32.mxu0 0.0
  %287 = vmatmul.mubr.f32.gmra.mrb[0].mxu0 %v99
  %v288 = vpop.f32.mrb[0].mxu0
  %v289 = vadd.f32 %v53, %v288
  %v290 = vpop.f32.mrb[0].mxu0
  %291 = vmatprep.mubr.f32.mxu0 0.0
  %292 = vmatmul.mubr.f32.gmra.mrb[0].mxu0 %v102
  %v293 = vpop.f32.mrb[0].mxu0
  %v294 = vadd.f32 %v53, %v293
  %v295 = vpop.f32.mrb[0].mxu0
  %296 = vmatprep.mubr.f32.mxu0 0.0
  %297 = vmatmul.mubr.f32.gmra.mrb[0].mxu0 %v105
  %v298 = vpop.f32.mrb[0].mxu0
  %v299 = vadd.f32 %v53, %v298
  %v300 = vpop.f32.mrb[0].mxu0
  %301 = vmatprep.mubr.f32.mxu0 0.0
  %302 = vmatmul.mubr.f32.gmra.mrb[0].mxu0 %v108
  %v303 = vpop.f32.mrb[0].mxu0
  %v304 = vadd.f32 %v53, %v303
  %v305 = vpop.f32.mrb[0].mxu0
  %306 = vmatprep.mubr.f32.mxu0 0.0
  %307 = vmatmul.mubr.f32.gmra.mrb[0].mxu0 %v111
  %v308 = vpop.f32.mrb[0].mxu0
  %v309 = vadd.f32 %v53, %v308
  %v310 = vpop.f32.mrb[0].mxu0
  %311 = vmatprep.mubr.f32.mxu0 0.0
  %312 = vmatmul.mubr.f32.gmra.mrb[0].mxu0 %v114
  %v313 = vpop.f32.mrb[0].mxu0
  %v314 = vadd.f32 %v53, %v313
  %v315 = vpop.f32.mrb[0].mxu0
  %316 = vmatprep.mubr.f32.mxu0 0.0
  %317 = vmatmul.mubr.f32.gmra.mrb[0].mxu0 %v117
  %v318 = vpop.f32.mrb[0].mxu0
  %v319 = vadd.f32 %v53, %v318
  %v320 = vpop.f32.mrb[0].mxu0
  %321 = vmatprep.mubr.f32.mxu0 0.0
  %322 = vmatmul.mubr.f32.gmra.mrb[0].mxu0 %v120
  %v323 = vpop.f32.mrb[0].mxu0
  %v324 = vadd.f32 %v53, %v323
  %v325 = vpop.f32.mrb[0].mxu0
  %326 = vmatprep.mubr.f32.mxu0 0.0
  %327 = vmatmul.mubr.f32.gmra.mrb[0].mxu0 %v123
  %v328 = vpop.f32.mrb[0].mxu0
  %v329 = vadd.f32 %v53, %v328
  %v330 = vpop.f32.mrb[0].mxu0
  %331 = vmatprep.mubr.f32.mxu0 0.0
  %332 = vmatmul.mubr.f32.gmra.mrb[0].mxu0 %v126
  %v333 = vpop.f32.mrb[0].mxu0
  %v334 = vadd.f32 %v53, %v333
  %v335 = vpop.f32.mrb[0].mxu0
  %336 = vmatprep.mubr.f32.mxu0 0.0
  %337 = vmatmul.mubr.f32.gmra.mrb[0].mxu0 %v129
  %v338 = vpop.f32.mrb[0].mxu0
  %v339 = vadd.f32 %v53, %v338
  %v340 = vpop.f32.mrb[0].mxu0
  %341 = vmatprep.mubr.f32.mxu0 0.0
  %342 = vmatmul.mubr.f32.gmra.mrb[0].mxu0 %v132
  %v343 = vpop.f32.mrb[0].mxu0
  %v344 = vadd.f32 %v53, %v343
  %v345 = vpop.f32.mrb[0].mxu0
  %346 = vmatprep.mubr.f32.mxu0 0.0
  %347 = vmatmul.mubr.f32.gmra.mrb[0].mxu0 %v135
  %v348 = vpop.f32.mrb[0].mxu0
  %v349 = vadd.f32 %v53, %v348
  %v350 = vpop.f32.mrb[0].mxu0
  %351 = vmatprep.mubr.f32.mxu0 0.0
  %352 = vmatmul.mubr.f32.gmra.mrb[0].mxu0 %v138
  %v353 = vpop.f32.mrb[0].mxu0
  %v354 = vadd.f32 %v53, %v353
  %v355 = vpop.f32.mrb[0].mxu0
  %356 = vmatprep.mubr.f32.mxu0 0.0
  %357 = vmatmul.mubr.f32.gmra.mrb[0].mxu0 %v141
  %v358 = vpop.f32.mrb[0].mxu0
  %v359 = vadd.f32 %v53, %v358
  %v360 = vpop.f32.mrb[0].mxu0
  %361 = vmatprep.mubr.f32.mxu0 0.0
  %362 = vmatmul.mubr.f32.gmra.mrb[0].mxu0 %v144
  %v363 = vpop.f32.mrb[0].mxu0
  %v364 = vadd.f32 %v53, %v363
  %v365 = vpop.f32.mrb[0].mxu0
  %366 = vmatprep.mubr.f32.mxu0 0.0
  %367 = vmatmul.mubr.f32.gmra.mrb[0].mxu0 %v147
  %v368 = vpop.f32.mrb[0].mxu0
  %v369 = vadd.f32 %v53, %v368
  %v370 = vpop.f32.mrb[0].mxu0
  %371 = vmatprep.mubr.f32.mxu0 0.0
  %372 = vmatmul.mubr.f32.gmra.mrb[0].mxu0 %v150
  %v373 = vpop.f32.mrb[0].mxu0
  %v374 = vadd.f32 %v53, %v373
  %v375 = vpop.f32.mrb[0].mxu0
  %376 = vdwg.mxu0
  %vm377 = vcmask 261120
  %378 = vst.msk [vmem:[%s3] sm:$0xff] %vm377, %v219
  %379 = vst.msk [vmem:[%s3 + $0x8] sm:$0xff] %vm377, %v224
  %380 = vst.msk [vmem:[%s3 + $0x10] sm:$0xff] %vm377, %v229
  %381 = vst.msk [vmem:[%s3 + $0x18] sm:$0xff] %vm377, %v234
  %382 = vst.msk [vmem:[%s3 + $0x20] sm:$0xff] %vm377, %v239
  %383 = vst.msk [vmem:[%s3 + $0x28] sm:$0xff] %vm377, %v244
  %384 = vst.msk [vmem:[%s3 + $0x30] sm:$0xff] %vm377, %v249
  %385 = vst.msk [vmem:[%s3 + $0x38] sm:$0xff] %vm377, %v254
  %386 = vst.msk [vmem:[%s3 + $0x40] sm:$0xff] %vm377, %v259
  %387 = vst.msk [vmem:[%s3 + $0x48] sm:$0xff] %vm377, %v264
  %388 = vst.msk [vmem:[%s3 + $0x50] sm:$0xff] %vm377, %v269
  %389 = vst.msk [vmem:[%s3 + $0x58] sm:$0xff] %vm377, %v274
  %390 = vst.msk [vmem:[%s3 + $0x60] sm:$0xff] %vm377, %v279
  %391 = vst.msk [vmem:[%s3 + $0x68] sm:$0xff] %vm377, %v284
  %392 = vst.msk [vmem:[%s3 + $0x70] sm:$0xff] %vm377, %v289
  %393 = vst.msk [vmem:[%s3 + $0x78] sm:$0xff] %vm377, %v294
  %394 = vst.msk [vmem:[%s3 + $0x80] sm:$0xff] %vm377, %v299
  %395 = vst.msk [vmem:[%s3 + $0x88] sm:$0xff] %vm377, %v304
  %396 = vst.msk [vmem:[%s3 + $0x90] sm:$0xff] %vm377, %v309
  %397 = vst.msk [vmem:[%s3 + $0x98] sm:$0xff] %vm377, %v314
  %398 = vst.msk [vmem:[%s3 + $0xa0] sm:$0xff] %vm377, %v319
  %399 = vst.msk [vmem:[%s3 + $0xa8] sm:$0xff] %vm377, %v324
  %400 = vst.msk [vmem:[%s3 + $0xb0] sm:$0xff] %vm377, %v329
  %401 = vst.msk [vmem:[%s3 + $0xb8] sm:$0xff] %vm377, %v334
  %402 = vst.msk [vmem:[%s3 + $0xc0] sm:$0xff] %vm377, %v339
  %403 = vst.msk [vmem:[%s3 + $0xc8] sm:$0xff] %vm377, %v344
  %404 = vst.msk [vmem:[%s3 + $0xd0] sm:$0xff] %vm377, %v349
  %405 = vst.msk [vmem:[%s3 + $0xd8] sm:$0xff] %vm377, %v354
  %406 = vst.msk [vmem:[%s3 + $0xe0] sm:$0xff] %vm377, %v359
  %407 = vst.msk [vmem:[%s3 + $0xe8] sm:$0xff] %vm377, %v364
  %408 = vst.msk [vmem:[%s3 + $0xf0] sm:$0xff] %vm377, %v369
  %409 = vst.msk [vmem:[%s3 + $0xf8] sm:$0xff] %vm377, %v374
  // Predicated region
  $region14: #{tpu_custom_call.1} parent=0 // pred_check
    _
  $region15: #{tpu_custom_call.1} parent=0 // pred_check_branch
    %411 = sbr.rel (0) target = $region17
  $region16: #{tpu_custom_call.1} parent=0 // pred_region
    _
  $region17: #{tpu_custom_call.1} parent=0 // pred_fallthru
    _
  // Predicated region
  $region18: #{tpu_custom_call.1} parent=0 // pred_check
    _
  $region19: #{tpu_custom_call.1} parent=0 // pred_check_branch
    %413 = sbr.rel (0) target = $region21
  $region20: #{tpu_custom_call.1} parent=0 // pred_region
    _
  $region21: #{tpu_custom_call.1} parent=0 // pred_fallthru
    _

</llo_original>
